<compile_context>
chip_gen: v7x
topology: tpu7x:2x2x1
jax: 0.10.0
libtpu: 0.0.40
codegen_flags: <defaults>
</compile_context>

<pallas_src>
import functools

import jax
import jax.numpy as jnp
from jax.experimental import pallas as pl
from jax.experimental.pallas import tpu as pltpu


def _round_up(x, m):
    return ((x + m - 1) // m) * m


def _cdiv(a, b):
    return -(-a // b)


def _vmem_capacity_bytes():
    """Best-effort per-core VMEM capacity; conservative (v7x) fallback."""
    try:
        cap = getattr(pltpu.get_tpu_info(), "vmem_capacity_bytes", None)
        if cap:
            return int(cap)
    except Exception:
        pass
    return 64 * 1024 * 1024


def _choose_tiling(rows, r_cap, r_align):
    """Pick (n_tiles, rows-per-tile R).

    * R is a multiple of r_align (128 normally -> lane-dense per-row stores,
      8 only as a fallback for enormous heatmaps that blow the VMEM budget).
    * At least 2 tiles whenever feasible so v7x megacore can shard the grid.
    * Otherwise a single full-extent tile (always a legal block shape).
    """
    if rows <= min(128, r_cap):
        return 1, rows
    n_tiles = max(2, _cdiv(rows, r_cap))
    R = _round_up(_cdiv(rows, n_tiles), r_align)
    n_tiles = _cdiv(rows, R)
    if n_tiles == 1:
        return 1, rows
    return n_tiles, R


def _make_masked_sum_kernel(thresh1, rows, R):
    """Non-OHKM: per-tile partial sum of (pred - gt*(valid>t1))^2."""

    def kernel(pred_ref, valid_ref, label_ref, out_ref):
        pred = pred_ref[...].astype(jnp.float32)                       # (R, HW)
        gt = label_ref[...].astype(jnp.float32)                        # (R, HW)
        w = (valid_ref[...].astype(jnp.float32) > thresh1).astype(jnp.float32)  # (R, 1)
        d = pred - gt * w
        per_row = jnp.sum(d * d, axis=-1, keepdims=True)               # (R, 1)
        # Mask the ragged last tile's pad rows: their input data is garbage
        # (possibly Inf/NaN), so select 0 rather than multiply by 0.
        row_ids = (pl.program_id(0) * R
                   + jax.lax.broadcasted_iota(jnp.int32, (R, 1), 0))
        per_row = jnp.where(row_ids < rows, per_row, 0.0)
        s = jnp.sum(per_row)
        # Lane-dense (1, 128) store: partial sum in lane 0, zeros elsewhere,
        # so the wrapper finishes with a single jnp.sum over the whole output.
        lane = jax.lax.broadcasted_iota(jnp.int32, (1, 128), 1)
        out_ref[...] = jnp.where(lane == 0, s, 0.0).astype(jnp.float32)

    return kernel


def _rowsq_kernel(pred_ref, label_ref, out_ref):
    """OHKM: per-row (per-keypoint) sum of squared error, lane-dense (1, R)."""
    d = pred_ref[...].astype(jnp.float32) - label_ref[...].astype(jnp.float32)
    per_row = jnp.sum(d * d, axis=-1)                                   # (R,)
    out_ref[...] = per_row[None, :]                                     # (1, R)


@functools.partial(
    jax.jit,
    static_argnames=("has_ohkm", "topk", "thresh1", "thresh2", "stream_bf16"))
def joints_l2_loss(output, valid, label, *, has_ohkm=False, topk=8,
                   thresh1=1, thresh2=0, stream_bf16=False):
    """Pallas implementation of JointsL2Loss.forward.

    output, label: (B, K, H, W) float32 or bfloat16
    valid:         (B, K, 1)    float
    returns scalar float32 loss.
    """
    assert output.shape == label.shape
    B, K, H, W = output.shape
    HW = H * W
    rows = B * K

    pred2 = output.reshape(rows, HW)
    lab2 = label.reshape(rows, HW)
    if stream_bf16 and pred2.dtype == jnp.float32:
        # Halves HBM traffic (the kernel is purely bandwidth bound); the
        # in-kernel accumulation stays f32.
        pred2 = pred2.astype(jnp.bfloat16)
        lab2 = lab2.astype(jnp.bfloat16)
    val2 = valid.reshape(rows, 1).astype(jnp.float32)

    itemsize = jnp.dtype(pred2.dtype).itemsize

    # Generation-aware budget for the resident footprint
    # (2 streamed inputs x 2 pipeline buffers x R x HW x itemsize).
    vmem = _vmem_capacity_bytes()
    if vmem >= 96 * 1024 * 1024:          # v5e / v6e: 128 MiB VMEM
        budget, vmem_limit, row_cap = 48 << 20, 96 << 20, 4096
    else:                                 # v7x: 64 MiB per TensorCore
        budget, vmem_limit, row_cap = 16 << 20, 32 << 20, 1024
    budget_rows = budget // (4 * HW * itemsize)
    r_align = 128 if budget_rows >= 128 else 8
    r_cap = min(row_cap, max(r_align, (budget_rows // r_align) * r_align))
    n_tiles, R = _choose_tiling(rows, r_cap, r_align)

    row_spec = pl.BlockSpec((R, HW), lambda i: (i, 0))
    col_spec = pl.BlockSpec((R, 1), lambda i: (i, 0))
    # Optional sweep (not enabled): pipeline_mode=pl.Buffered(3) on row_spec
    # if a profile shows exposed DMA with many small tiles.

    cparams = pltpu.CompilerParams(
        dimension_semantics=("parallel",),
        vmem_limit_bytes=vmem_limit,
    )
    cost = pl.CostEstimate(
        flops=4 * rows * HW,
        transcendentals=0,
        bytes_accessed=2 * rows * HW * itemsize + rows * 4 + n_tiles * R * 4,
    )

    if not has_ohkm:
        partials = pl.pallas_call(
            _make_masked_sum_kernel(float(thresh1), rows, R),
            out_shape=jax.ShapeDtypeStruct((n_tiles, 128), jnp.float32),
            grid=(n_tiles,),
            in_specs=[row_spec, col_spec, row_spec],
            out_specs=pl.BlockSpec((1, 128), lambda i: (i, 0)),
            compiler_params=cparams,
            cost_estimate=cost,
        )(pred2, val2, lab2)
        # loss = sum of masked squared error / (B * K * HW)
        return jnp.sum(partials) / float(B * K * HW)

    per_row_sq = pl.pallas_call(
        _rowsq_kernel,
        out_shape=jax.ShapeDtypeStruct((n_tiles, R), jnp.float32),
        grid=(n_tiles,),
        in_specs=[row_spec, row_spec],
        out_specs=pl.BlockSpec((1, R), lambda i: (i, 0)),
        compiler_params=cparams,
        cost_estimate=cost,
    )(pred2, lab2)

    # Trailing n_tiles*R - rows entries are padding from the ragged last tile.
    per_kp_sq = per_row_sq.reshape(-1)[:rows].reshape(B, K)
    per_kp_mean = per_kp_sq / float(HW)
    w2 = (valid.reshape(B, K).astype(jnp.float32) > float(thresh2)).astype(
        jnp.float32)
    # TODO(synk): top-k over the tiny keypoint axis stays in plain-JAX glue.
    topk_vals, _ = jax.lax.top_k(per_kp_mean * w2, topk)
    return topk_vals.mean(axis=1).sum() / float(B)


def _reference_loss(output, valid, label, *, has_ohkm=False, topk=8,
                    thresh1=1, thresh2=0):
    """Pure-JAX re-implementation of the torch forward (for verification)."""
    B, K = output.shape[:2]
    pred = output.reshape(B, K, -1).astype(jnp.float32)
    gt = label.reshape(B, K, -1).astype(jnp.float32)
    valid = valid.reshape(B, K, 1).astype(jnp.float32)
    if not has_ohkm:
        gt = gt * (valid > thresh1).astype(jnp.float32)
        sample_loss = jnp.mean((pred - gt) ** 2, axis=(1, 2))
    else:
        per_kp = jnp.mean((pred - gt) ** 2, axis=2)
        per_kp = per_kp * (valid[..., 0] > thresh2).astype(jnp.float32)
        sample_loss = jax.lax.top_k(per_kp, topk)[0].mean(axis=1)
    return sample_loss.sum() / float(B)


if __name__ == "__main__":
    # JointsL2Loss has no learnable parameters; only flags/thresholds.
    B, K, H, W = 2, 4, 16, 16

    key = jax.random.PRNGKey(0)
    k1, k2, k3 = jax.random.split(key, 3)
    output = jax.random.normal(k1, (B, K, H, W), dtype=jnp.float32)
    label = jax.random.normal(k2, (B, K, H, W), dtype=jnp.float32)
    # valid values in {0, 1, 2} to exercise the (> thresh1) mask.
    valid = jax.random.randint(k3, (B, K, 1), 0, 3).astype(jnp.float32)

    # Default config: has_ohkm=False (MSE over masked labels, batch-averaged).
    loss = jax.block_until_ready(joints_l2_loss(output, valid, label))
    ref = _reference_loss(output, valid, label)
    assert jnp.allclose(loss, ref, rtol=1e-5, atol=1e-6), (loss, ref)

    # OHKM branch (topk must be <= K for this tiny example).
    loss_ohkm = jax.block_until_ready(
        joints_l2_loss(output, valid, label, has_ohkm=True, topk=2))
    ref_ohkm = _reference_loss(output, valid, label, has_ohkm=True, topk=2)
    assert jnp.allclose(loss_ohkm, ref_ohkm, rtol=1e-5, atol=1e-6), (
        loss_ohkm, ref_ohkm)

    # bf16 heatmaps at the boundary (kernel accumulates in f32).
    out_bf16 = output.astype(jnp.bfloat16)
    lab_bf16 = label.astype(jnp.bfloat16)
    loss_bf16 = jax.block_until_ready(
        joints_l2_loss(out_bf16, valid, lab_bf16))
    ref_bf16 = _reference_loss(out_bf16, valid, lab_bf16)
    assert jnp.allclose(loss_bf16, ref_bf16, rtol=1e-4, atol=1e-5), (
        loss_bf16, ref_bf16)

    # Larger case exercising the multi-tile, ragged-last-tile path
    # (rows = 81*16 = 1296 does not divide evenly into 128-aligned tiles).
    B2, K2, H2, W2 = 81, 16, 8, 8
    k4, k5, k6 = jax.random.split(jax.random.PRNGKey(1), 3)
    out_big = jax.random.normal(k4, (B2, K2, H2, W2), dtype=jnp.float32)
    lab_big = jax.random.normal(k5, (B2, K2, H2, W2), dtype=jnp.float32)
    val_big = jax.random.randint(k6, (B2, K2, 1), 0, 3).astype(jnp.float32)

    loss_big = jax.block_until_ready(joints_l2_loss(out_big, val_big, lab_big))
    ref_big = _reference_loss(out_big, val_big, lab_big)
    assert jnp.allclose(loss_big, ref_big, rtol=1e-4, atol=1e-6), (
        loss_big, ref_big)

    loss_big_ohkm = jax.block_until_ready(
        joints_l2_loss(out_big, val_big, lab_big, has_ohkm=True, topk=8))
    ref_big_ohkm = _reference_loss(out_big, val_big, lab_big,
                                   has_ohkm=True, topk=8)
    assert jnp.allclose(loss_big_ohkm, ref_big_ohkm, rtol=1e-4, atol=1e-6), (
        loss_big_ohkm, ref_big_ohkm)

    print("KERNEL_OK")
</pallas_src>

<mosaic_0001>
module attributes {stable_mosaic.version = 11 : i64} {
  func.func @kernel(%arg0: i32, %arg1: memref<8x256xf32, #tpu.memory_space<vmem>>, %arg2: memref<8x1xf32, #tpu.memory_space<vmem>>, %arg3: memref<8x256xf32, #tpu.memory_space<vmem>>, %arg4: memref<1x128xf32, #tpu.memory_space<vmem>>) attributes {dimension_semantics = [#tpu.dimension_semantics<parallel>], iteration_bounds = array<i64: 1>, scalar_prefetch = 0 : i64, scratch_operands = 0 : i64, tpu.core_type = #tpu.core_type<tc>, window_params = [{transform_indices = @transform_0, window_bounds = array<i64: 8, 256>}, {transform_indices = @transform_1, window_bounds = array<i64: 8, 1>}, {transform_indices = @transform_2, window_bounds = array<i64: 8, 256>}, {transform_indices = @transform_3, window_bounds = array<i64: 1, 128>}]} {
    %c0 = arith.constant 0 : index
    %c0_0 = arith.constant 0 : index
    %0 = vector.load %arg1[%c0, %c0_0] : memref<8x256xf32, #tpu.memory_space<vmem>>, vector<8x256xf32>
    %c0_1 = arith.constant 0 : index
    %c0_2 = arith.constant 0 : index
    %1 = vector.load %arg3[%c0_1, %c0_2] : memref<8x256xf32, #tpu.memory_space<vmem>>, vector<8x256xf32>
    %c0_3 = arith.constant 0 : index
    %c0_4 = arith.constant 0 : index
    %2 = vector.load %arg2[%c0_3, %c0_4] : memref<8x1xf32, #tpu.memory_space<vmem>>, vector<8x1xf32>
    %cst = arith.constant 1.000000e+00 : f32
    %3 = vector.broadcast %cst : f32 to vector<8x1xf32>
    %4 = arith.cmpf ogt, %2, %3 : vector<8x1xf32>
    %5 = arith.extui %4 : vector<8x1xi1> to vector<8x1xi32>
    %6 = arith.sitofp %5 : vector<8x1xi32> to vector<8x1xf32>
    %7 = vector.broadcast %6 : vector<8x1xf32> to vector<8x256xf32>
    %8 = arith.mulf %1, %7 : vector<8x256xf32>
    %9 = arith.subf %0, %8 : vector<8x256xf32>
    %10 = arith.mulf %9, %9 : vector<8x256xf32>
    %cst_5 = arith.constant dense<0.000000e+00> : vector<8xf32>
    %11 = vector.multi_reduction <add>, %10, %cst_5 [1] : vector<8x256xf32> to vector<8xf32>
    %12 = vector.shape_cast %11 : vector<8xf32> to vector<8x1xf32>
    %c8_i32 = arith.constant 8 : i32
    %13 = arith.muli %arg0, %c8_i32 : i32
    %14 = tpu.iota {dimensions = array<i32: 0>} : vector<8x1xi32>
    %15 = vector.broadcast %13 : i32 to vector<8x1xi32>
    %16 = arith.addi %15, %14 : vector<8x1xi32>
    %c8_i32_6 = arith.constant 8 : i32
    %17 = vector.broadcast %c8_i32_6 : i32 to vector<8x1xi32>
    %18 = arith.cmpi slt, %16, %17 : vector<8x1xi32>
    %cst_7 = arith.constant 0.000000e+00 : f32
    %19 = vector.broadcast %cst_7 : f32 to vector<8x1xf32>
    %20 = arith.select %18, %12, %19 : vector<8x1xi1>, vector<8x1xf32>
    %21 = vector.shape_cast %20 : vector<8x1xf32> to vector<1x8x1xf32>
    %cst_8 = arith.constant dense<0.000000e+00> : vector<1xf32>
    %22 = vector.multi_reduction <add>, %21, %cst_8 [1, 2] : vector<1x8x1xf32> to vector<1xf32>
    %23 = vector.shape_cast %22 : vector<1xf32> to vector<1x1x1xf32>
    %24 = vector.extract %23[0, 0, 0] : f32 from vector<1x1x1xf32>
    %25 = tpu.iota {dimensions = array<i32: 1>} : vector<1x128xi32>
    %c0_i32 = arith.constant 0 : i32
    %26 = vector.broadcast %c0_i32 : i32 to vector<1x128xi32>
    %27 = arith.cmpi eq, %25, %26 : vector<1x128xi32>
    %cst_9 = arith.constant 0.000000e+00 : f32
    %28 = vector.broadcast %24 : f32 to vector<1x128xf32>
    %29 = vector.broadcast %cst_9 : f32 to vector<1x128xf32>
    %30 = arith.select %27, %28, %29 : vector<1x128xi1>, vector<1x128xf32>
    %c0_10 = arith.constant 0 : index
    %c0_11 = arith.constant 0 : index
    %31 = vector.load %arg4[%c0_10, %c0_11] : memref<1x128xf32, #tpu.memory_space<vmem>>, vector<1x128xf32>
    tpu.vector_store %arg4[%c0_10, %c0_11], %30 {strides = array<i32>} : memref<1x128xf32, #tpu.memory_space<vmem>>, vector<1x128xf32>,
    return
  }
  func.func @transform_0(%arg0: i32) -> (i32, i32) {
    %c0_i32 = arith.constant 0 : i32
    %c0_i32_0 = arith.constant 0 : i32
    return %arg0, %c0_i32 : i32, i32
  }
  func.func @transform_1(%arg0: i32) -> (i32, i32) {
    %c0_i32 = arith.constant 0 : i32
    %c0_i32_0 = arith.constant 0 : i32
    return %arg0, %c0_i32 : i32, i32
  }
  func.func @transform_2(%arg0: i32) -> (i32, i32) {
    %c0_i32 = arith.constant 0 : i32
    %c0_i32_0 = arith.constant 0 : i32
    return %arg0, %c0_i32 : i32, i32
  }
  func.func @transform_3(%arg0: i32) -> (i32, i32) {
    %c0_i32 = arith.constant 0 : i32
    %c0_i32_0 = arith.constant 0 : i32
    return %arg0, %c0_i32 : i32, i32
  }
}

</mosaic_0001>

<llo_original>
// kernel: joints_l2_loss.1
$region0: #{joints_l2_loss.1}
  #allocation0 [shape = 'u32[]', space=smem, size = 0x4, offset = 0x4, fixed_abs, tag = 'smem constant byte address 0x4 - core index']
  #allocation1 [shape = 'u32[144,128]{1,0:T(1,128)}', space=vmem, size = 0x12000, scoped, tag = 'internal scratch']
  %s0 = inlined_call_operand.vmem [shape: f32[8,256], index: 0, kind: input, shape index: {}]
  %s1 = inlined_call_operand.vmem [shape: f32[8,1], index: 1, kind: input, shape index: {}]
  %s2 = inlined_call_operand.vmem [shape: f32[8,256], index: 2, kind: input, shape index: {}]
  %s3 = inlined_call_operand.vmem [shape: f32[1,128], index: 3, kind: output, shape index: {}]
  %s4 = sld [smem:[#allocation0]]
  $region22: #{joints_l2_loss.1} parent=0
    _
  %s6 = ssub.s32 1, %s4
  %s7 = scalar_select 0, %s6, %s4
  // Predicated region
  $region2: #{joints_l2_loss.1} parent=0 // pred_check
    _
  $region3: #{joints_l2_loss.1} parent=0 // pred_check_branch
    %9 = sbr.rel (0) target = $region5
  $region4: #{joints_l2_loss.1} parent=0 // pred_region
    _
  $region5: #{joints_l2_loss.1} parent=0 // pred_fallthru
    _
  // Predicated region
  $region6: #{joints_l2_loss.1} parent=0 // pred_check
    _
  $region7: #{joints_l2_loss.1} parent=0 // pred_check_branch
    %11 = sbr.rel (0) target = $region9
  $region8: #{joints_l2_loss.1} parent=0 // pred_region
    _
  $region9: #{joints_l2_loss.1} parent=0 // pred_fallthru
    _
  // Predicated region
  $region10: #{joints_l2_loss.1} parent=0 // pred_check
    _
  $region11: #{joints_l2_loss.1} parent=0 // pred_check_branch
    %13 = sbr.rel (0) target = $region13
  $region12: #{joints_l2_loss.1} parent=0 // pred_region
    _
  $region13: #{joints_l2_loss.1} parent=0 // pred_fallthru
    _
  %v14 = vld [vmem:[%s0] sm:$0xff]
  %v15 = vld [vmem:[%s0 + $0x8] sm:$0xff]
  %v16 = vld [vmem:[%s2] sm:$0xff]
  %v17 = vld [vmem:[%s2 + $0x8] sm:$0xff]
  %v18 = vld [vmem:[%s1] sm:$0xff]
  %vm19 = vcmp.gt.f32.partialorder %v18, 1.0
  %v20 = vsel %vm19, 1, 0
  %v21 = vcvt.s32.f32 %v20
  %23 = vset.pattern.permute.xlu0 0
  %24 = vperm.xlu0 %23, %v21
  %v25 = vpop.permute.xlu0 %24
  %v27 = vmul.f32 %v16, %v25
  %v28 = vmul.f32 %v17, %v25
  %v29 = vsub.f32 %v14, %v27
  %v30 = vsub.f32 %v15, %v28
  %v31 = vmul.f32 %v29, %v29
  %v32 = vmul.f32 %v30, %v30
  %v33 = vadd.f32 %v31, %v32
  %34 = vadd.xlane.f32.xlu0 %v33
  %v35 = vpop.xlane.xlu0 %34
  %s36 = smul.u32 0, 8
  %v37 = vlaneseq
  %v38 = vshrl.u32 %v37, 7
  %v39 = vstv %s36
  %v40 = vadd.s32 %v39, %v38
  %vm41 = vcmp.lt.s32.totalorder %v40, 8
  %v42 = vsel %vm41, %v35, 0.0
  %vm43 = vcmask 7168
  %v44 = vsel %vm43, %v42, 0.0
  %45 = vadd.xlane.f32.xlu0 %v44
  %v46 = vpop.xlane.xlu0 %45
  %v47 = vrot.slane %v46, 4
  %v48 = vadd.f32 %v46, %v47
  %v49 = vrot.slane %v48, 2
  %v50 = vadd.f32 %v48, %v49
  %v51 = vrot.slane %v50, 1
  %v52 = vadd.f32 %v50, %v51
  %s53 = vtos %v52
  %v54 = vlaneseq
  %v55 = vand.u32 %v54, 127
  %vm56 = vcmp.eq.s32.totalorder %v55, 0
  %v57 = vstv %s53
  %v58 = vsel %vm56, %v57, 0.0
  %59 = vst [vmem:[%s3] sm:$0x1] %v58
  // Predicated region
  $region14: #{joints_l2_loss.1} parent=0 // pred_check
    _
  $region15: #{joints_l2_loss.1} parent=0 // pred_check_branch
    %61 = sbr.rel (0) target = $region17
  $region16: #{joints_l2_loss.1} parent=0 // pred_region
    _
  $region17: #{joints_l2_loss.1} parent=0 // pred_fallthru
    _
  // Predicated region
  $region18: #{joints_l2_loss.1} parent=0 // pred_check
    _
  $region19: #{joints_l2_loss.1} parent=0 // pred_check_branch
    %63 = sbr.rel (0) target = $region21
  $region20: #{joints_l2_loss.1} parent=0 // pred_region
    _
  $region21: #{joints_l2_loss.1} parent=0 // pred_fallthru
    _

</llo_original>
